<compile_context>
chip_gen: v7x
topology: tpu7x:2x2x1
jax: 0.10.0
libtpu: 0.0.40
codegen_flags: <defaults>
</compile_context>

<pallas_src>
import functools
import math

import jax
import jax.numpy as jnp
from jax import lax
from jax.experimental import pallas as pl
from jax.experimental.pallas import tpu as pltpu

_LANES = 128
_SUBLANES = 8


# ----------------------------------------------------------------------------
# Kernel: per-block log-cosh partial sums
# ----------------------------------------------------------------------------
def _logcosh_kernel(*refs, tau, has_mask, needs_tail, remaining):
    if has_mask:
        pred_ref, true_ref, mask_ref, out_ref = refs
    else:
        pred_ref, true_ref, out_ref = refs

    x = pred_ref[...].astype(jnp.float32) - true_ref[...].astype(jnp.float32)
    if has_mask:
        keep = mask_ref[...].astype(jnp.float32) > 0.0
        x = jnp.where(keep, x, 0.0)

    ax = jnp.abs(x)
    # log(cosh(x)) = |x| + log1p(exp(-2|x|)) - log(2); exp arg <= 0 so it never
    # overflows -> no softplus threshold compare / min / select needed.
    loss = ax + jnp.log1p(jnp.exp(-2.0 * ax)) - math.log(2.0)
    if tau > 0.0:  # static Python float baked in at trace time
        loss = jnp.where(ax > tau, loss, 0.0)

    def _store(vals):
        # Reduce this block to one (8,128) f32 tile: sublane-group vector adds
        # only (no in-kernel cross-lane reduce), lane-dense unmasked store.
        out_ref[...] = jnp.sum(vals.reshape(-1, _SUBLANES, _LANES), axis=0)

    if needs_tail:
        is_last = pl.program_id(0) == pl.num_programs(0) - 1

        @pl.when(is_last)
        def _():
            r, c = loss.shape
            local = (lax.broadcasted_iota(jnp.int32, (r, c), 0) * c
                     + lax.broadcasted_iota(jnp.int32, (r, c), 1))
            _store(jnp.where(local < remaining, loss, 0.0))

        @pl.when(jnp.logical_not(is_last))
        def _():
            _store(loss)
    else:
        _store(loss)


# ----------------------------------------------------------------------------
# Wrapper
# ----------------------------------------------------------------------------
def log_cosh_loss_pallas(y_pred, y_true, clip_tau=0.0, mask=None, *,
                         block_rows=None):
    """mean(logcosh(y_pred - y_true)) with optional mask / clip_tau via Pallas."""
    y_pred = jnp.asarray(y_pred)
    y_true = jnp.asarray(y_true)
    assert y_pred.shape == y_true.shape, (y_pred.shape, y_true.shape)
    n = int(y_pred.size)
    assert n > 0

    inputs = [y_pred.reshape(-1), y_true.reshape(-1)]
    if mask is not None:
        mask = jnp.asarray(mask)
        assert mask.shape == y_pred.shape, (mask.shape, y_pred.shape)
        # Single bf16 side input (2 B/elem) instead of two full-size masked
        # copies of pred/true materialized in HBM by wrapper-side jnp.where.
        inputs.append(mask.reshape(-1).astype(jnp.bfloat16))

    # Lane-dense layout: (rows, 128) with rows a multiple of 8.
    rows = -(-n // _LANES)
    rows = -(-rows // _SUBLANES) * _SUBLANES
    padded = rows * _LANES

    # Block size: ~4 MiB per input per block by default (DMA time >> the fixed
    # per-step overhead on all generations), clamped so double-buffered inputs
    # stay well inside the VMEM limit.
    itemsizes = [x.dtype.itemsize for x in inputs]
    if block_rows is None:
        block_rows = (4 * 1024 * 1024) // (_LANES * max(itemsizes[:2]))
    max_br = (40 * 1024 * 1024) // (2 * _LANES * sum(itemsizes))
    br = min(int(block_rows), max_br)
    if br >= rows:
        br, grid = rows, 1                 # single full-dims block
    else:
        br = max(32, (br // 32) * 32)      # vreg-dense for f32 / bf16 / int8
        grid = -(-rows // br)              # partial last block allowed

    if padded != n:                        # pad only when actually needed
        inputs = [jnp.pad(x, (0, padded - n)) for x in inputs]
    inputs = [x.reshape(rows, _LANES) for x in inputs]

    needs_tail = (n != grid * br * _LANES)    # padding or partial last block
    remaining = n - (grid - 1) * br * _LANES  # valid elems in the last block

    kernel = functools.partial(
        _logcosh_kernel, tau=float(clip_tau), has_mask=(mask is not None),
        needs_tail=needs_tail, remaining=remaining)

    in_spec = pl.BlockSpec((br, _LANES), lambda i: (i, 0))
    partials = pl.pallas_call(
        kernel,
        out_shape=jax.ShapeDtypeStruct((grid * _SUBLANES, _LANES), jnp.float32),
        grid_spec=pltpu.PrefetchScalarGridSpec(
            num_scalar_prefetch=0,
            grid=(grid,),
            in_specs=[in_spec] * len(inputs),
            out_specs=pl.BlockSpec((_SUBLANES, _LANES), lambda i: (i, 0)),
        ),
        compiler_params=pltpu.CompilerParams(
            dimension_semantics=("parallel",),   # independent partial sums
            vmem_limit_bytes=48 * 1024 * 1024,   # headroom; < v7x 64MiB physical
        ),
    )(*inputs)
    return jnp.sum(partials) / jnp.float32(n)


# ----------------------------------------------------------------------------
# Module-equivalent wrapper
# ----------------------------------------------------------------------------
class LogCoshLoss:
    """JAX/Pallas port of moosenet.loss.LogCoshLoss (forward only)."""

    def __init__(self, clip_tau=0.0):
        assert 0 <= clip_tau, clip_tau
        self.tau = float(clip_tau)

    def __call__(self, y_pred, y_true, mask=None):
        # TODO(synk): torch mutates y_pred/y_true in place under ~mask; the JAX
        # version applies the mask in-kernel (same loss, no side effect).
        return log_cosh_loss_pallas(y_pred, y_true, self.tau, mask=mask)


# ----------------------------------------------------------------------------
# Pure-JAX reference (for correctness checking)
# ----------------------------------------------------------------------------
def _logcosh_ref(y_pred, y_true, mask=None, tau=0.0):
    y_pred = jnp.asarray(y_pred)
    y_true = jnp.asarray(y_true)
    if mask is not None:
        y_pred = jnp.where(mask, y_pred, 0)
        y_true = jnp.where(mask, y_true, 0)
    x = y_pred.astype(jnp.float32) - y_true.astype(jnp.float32)
    loss = x + jax.nn.softplus(-2.0 * x) - math.log(2.0)
    if tau > 0.0:
        loss = jnp.where(jnp.abs(x) > tau, loss, 0.0)
    return jnp.mean(loss)


def _check(got, want, tol):
    got = float(jax.block_until_ready(got))
    want = float(want)
    assert math.isfinite(got), got
    assert abs(got - want) <= tol * (1.0 + abs(want)), (got, want)


# ----------------------------------------------------------------------------
if __name__ == "__main__":
    key = jax.random.PRNGKey(0)
    k1, k2, k3 = jax.random.split(key, 3)

    shape = (2, 4, 16, 16)  # batch=2, channels=4, spatial=16x16
    y_pred = jax.random.normal(k1, shape, jnp.float32)
    y_true = jax.random.normal(k2, shape, jnp.float32)
    mask = jax.random.bernoulli(k3, 0.8, shape)

    # Case 1: plain log-cosh, no mask, no clipping (single-block fast path).
    mod = LogCoshLoss(clip_tau=0.0)
    _check(mod(y_pred, y_true), _logcosh_ref(y_pred, y_true), 1e-4)

    # Case 2: fused mask + clip_tau > 0.
    mod_tau = LogCoshLoss(clip_tau=0.5)
    _check(mod_tau(y_pred, y_true, mask=mask),
           _logcosh_ref(y_pred, y_true, mask=mask, tau=0.5), 1e-4)

    # Case 3: bf16 inputs, odd n (padded tail + partial last block, grid > 1).
    n_odd = 5000
    a = jax.random.normal(k1, (n_odd,), jnp.float32).astype(jnp.bfloat16)
    b = jax.random.normal(k2, (n_odd,), jnp.float32).astype(jnp.bfloat16)
    _check(log_cosh_loss_pallas(a, b, 0.0, block_rows=32),
           _logcosh_ref(a, b), 1e-3)

    # Case 4: multi-block f32 with fused mask + clip, no tail (n divides evenly).
    shape2 = (8, 4, 32, 32)  # 32768 elems -> rows=256, grid=4 at block_rows=64
    p2 = jax.random.normal(k1, shape2, jnp.float32)
    t2 = jax.random.normal(k2, shape2, jnp.float32)
    m2 = jax.random.bernoulli(k3, 0.7, shape2)
    _check(log_cosh_loss_pallas(p2, t2, 0.3, mask=m2, block_rows=64),
           _logcosh_ref(p2, t2, mask=m2, tau=0.3), 1e-4)

    print("KERNEL_OK")
</pallas_src>

<mosaic_0001>
module attributes {stable_mosaic.version = 11 : i64} {
  func.func @_logcosh_kernel(%arg0: i32, %arg1: memref<16x128xf32, #tpu.memory_space<vmem>>, %arg2: memref<16x128xf32, #tpu.memory_space<vmem>>, %arg3: memref<8x128xf32, #tpu.memory_space<vmem>>) attributes {dimension_semantics = [#tpu.dimension_semantics<parallel>], iteration_bounds = array<i64: 1>, scalar_prefetch = 0 : i64, scratch_operands = 0 : i64, tpu.core_type = #tpu.core_type<tc>, window_params = [{transform_indices = @transform_0, window_bounds = array<i64: 16, 128>}, {transform_indices = @transform_1, window_bounds = array<i64: 16, 128>}, {transform_indices = @transform_2, window_bounds = array<i64: 8, 128>}]} {
    %c0 = arith.constant 0 : index
    %c0_0 = arith.constant 0 : index
    %0 = vector.load %arg1[%c0, %c0_0] : memref<16x128xf32, #tpu.memory_space<vmem>>, vector<16x128xf32>
    %c0_1 = arith.constant 0 : index
    %c0_2 = arith.constant 0 : index
    %1 = vector.load %arg2[%c0_1, %c0_2] : memref<16x128xf32, #tpu.memory_space<vmem>>, vector<16x128xf32>
    %2 = arith.subf %0, %1 : vector<16x128xf32>
    %3 = math.absf %2 : vector<16x128xf32>
    %cst = arith.constant -2.000000e+00 : f32
    %4 = vector.broadcast %cst : f32 to vector<16x128xf32>
    %5 = arith.mulf %4, %3 : vector<16x128xf32>
    %6 = math.exp %5 : vector<16x128xf32>
    %7 = math.log1p %6 : vector<16x128xf32>
    %8 = arith.addf %3, %7 : vector<16x128xf32>
    %cst_3 = arith.constant 0.693147182 : f32
    %9 = vector.broadcast %cst_3 : f32 to vector<16x128xf32>
    %10 = arith.subf %8, %9 : vector<16x128xf32>
    %11 = vector.shape_cast %10 : vector<16x128xf32> to vector<2x8x128xf32>
    %cst_4 = arith.constant dense<0.000000e+00> : vector<8x128xf32>
    %12 = vector.multi_reduction <add>, %11, %cst_4 [0] : vector<2x8x128xf32> to vector<8x128xf32>
    %c0_5 = arith.constant 0 : index
    %c0_6 = arith.constant 0 : index
    %13 = vector.load %arg3[%c0_5, %c0_6] : memref<8x128xf32, #tpu.memory_space<vmem>>, vector<8x128xf32>
    tpu.vector_store %arg3[%c0_5, %c0_6], %12 {strides = array<i32>} : memref<8x128xf32, #tpu.memory_space<vmem>>, vector<8x128xf32>,
    return
  }
  func.func @transform_0(%arg0: i32) -> (i32, i32) {
    %c0_i32 = arith.constant 0 : i32
    %c0_i32_0 = arith.constant 0 : i32
    return %arg0, %c0_i32 : i32, i32
  }
  func.func @transform_1(%arg0: i32) -> (i32, i32) {
    %c0_i32 = arith.constant 0 : i32
    %c0_i32_0 = arith.constant 0 : i32
    return %arg0, %c0_i32 : i32, i32
  }
  func.func @transform_2(%arg0: i32) -> (i32, i32) {
    %c0_i32 = arith.constant 0 : i32
    %c0_i32_0 = arith.constant 0 : i32
    return %arg0, %c0_i32 : i32, i32
  }
}

</mosaic_0001>

<llo_original>
// kernel: tpu_custom_call.1
$region0: #{tpu_custom_call.1}
  #allocation0 [shape = 'u32[]', space=smem, size = 0x4, offset = 0x4, fixed_abs, tag = 'smem constant byte address 0x4 - core index']
  #allocation1 [shape = 'u32[144,128]{1,0:T(1,128)}', space=vmem, size = 0x12000, scoped, tag = 'internal scratch']
  %s0 = inlined_call_operand.hbm [shape: f32[16,128], index: 0, kind: input, shape index: {}]
  %s1 = inlined_call_operand.hbm [shape: f32[16,128], index: 1, kind: input, shape index: {}]
  %s2 = inlined_call_operand.hbm [shape: f32[8,128], index: 2, kind: output, shape index: {}]
  %s3 = sld [smem:[#allocation0]]
  $region26: #{tpu_custom_call.1} parent=0
    _
  %s5 = ssub.s32 1, %s3
  %s6 = scalar_select 0, %s5, %s3
  $region1: #{tpu_custom_call.1} parent=0
    #allocation2 [shape = 'u8[8192]{0}', space=vmem, size = 0x2000, scoped, tag = 'input window, operand 0, single buffered']
    #allocation3 [shape = 's32[1]{0}', space=sflag, size = 0x4, scoped, tag = 'scoped memory for tpu_custom_call.1']
    #allocation4 [shape = 's32[1]{0}', space=sflag, size = 0x4, scoped, tag = 'scoped memory for tpu_custom_call.1']
    #allocation5 [shape = 'u8[8192]{0}', space=vmem, size = 0x2000, scoped, tag = 'input window, operand 1, single buffered']
    #allocation6 [shape = 's32[1]{0}', space=sflag, size = 0x4, scoped, tag = 'scoped memory for tpu_custom_call.1']
    #allocation7 [shape = 'u8[4096]{0}', space=vmem, size = 0x1000, scoped, tag = 'output window, operand 0, single buffered']
    %7 = vsyncpa [#allocation3], 0
    %8 = vsyncpa [#allocation6], 0
    %9 = vsyncpa [#allocation4], 0
    // Predicated region
    $region2: #{tpu_custom_call.1} parent=1 // pred_check
      _
    $region3: #{tpu_custom_call.1} parent=1 // pred_check_branch
      %11 = sbr.rel (0) target = $region5
    $region4: #{tpu_custom_call.1} parent=1 // pred_region
      %s13 = ssub.s32 256, 256
      %14 = vsyncadd [#allocation3], %s13
      %s15 = sshll.u32 [#allocation2], 4
      %s16 = int_to_ptr.vmem [resolvable:$true] %s15
      %21 = dma.hbm_to_vmem [thread:$0]  %s0, 256, %s16, [#allocation3], 128, 128, 8
    $region5: #{tpu_custom_call.1} parent=1 // pred_fallthru
      _
    // Predicated region
    $region6: #{tpu_custom_call.1} parent=1 // pred_check
      _
    $region7: #{tpu_custom_call.1} parent=1 // pred_check_branch
      %23 = sbr.rel (0) target = $region9
    $region8: #{tpu_custom_call.1} parent=1 // pred_region
      %s25 = ssub.s32 256, 256
      %26 = vsyncadd [#allocation6], %s25
      %s27 = sshll.u32 [#allocation5], 4
      %s28 = int_to_ptr.vmem [resolvable:$true] %s27
      %33 = dma.hbm_to_vmem [thread:$0]  %s1, 256, %s28, [#allocation6], 128, 128, 8
    $region9: #{tpu_custom_call.1} parent=1 // pred_fallthru
      _
    // Predicated region
    $region10: #{tpu_custom_call.1} parent=1 // pred_check
      _
    $region11: #{tpu_custom_call.1} parent=1 // pred_check_branch
      %35 = sbr.rel (0) target = $region13
    $region12: #{tpu_custom_call.1} parent=1 // pred_region
      %36 = dma.done [#allocation3], 256
    $region13: #{tpu_custom_call.1} parent=1 // pred_fallthru
      _
    // Predicated region
    $region14: #{tpu_custom_call.1} parent=1 // pred_check
      _
    $region15: #{tpu_custom_call.1} parent=1 // pred_check_branch
      %38 = sbr.rel (0) target = $region17
    $region16: #{tpu_custom_call.1} parent=1 // pred_region
      %39 = dma.done [#allocation6], 256
    $region17: #{tpu_custom_call.1} parent=1 // pred_fallthru
      _
    %v40 = vld [vmem:[#allocation2] sm:$0xff]
    %v41 = vld [vmem:[#allocation2 + $0x8] sm:$0xff]
    %v42 = vld [vmem:[#allocation5] sm:$0xff]
    %v43 = vld [vmem:[#allocation5 + $0x8] sm:$0xff]
    %v44 = vsub.f32 %v40, %v42
    %v45 = vsub.f32 %v41, %v43
    %v46 = vand.u32 2147483647, %v44
    %v47 = vand.u32 2147483647, %v45
    %v48 = vmul.f32 %v46, -2.0
    %v49 = vmul.f32 %v47, -2.0
    %v50 = vmul.f32 %v48, 1.442695
    %v51 = vpow.pop %v50
    %v52 = vmul.f32 %v49, 1.442695
    %v53 = vpow.pop %v52
    %v54 = vadd.f32 %v51, 1.0
    %v55 = vlog2.pop %v54
    %v56 = vmul.f32 %v55, 0.6931472
    %v57 = vmul.f32 -0.5, %v51
    %v58 = vadd.f32 %v57, 1.0
    %v59 = vmul.f32 %v58, %v51
    %v60 = vand.u32 2147483647, %v51
    %vm61 = vcmp.lt.f32.partialorder %v60, 0.0004427343
    %v62 = vsel %vm61, %v59, %v56
    %v63 = vadd.f32 %v53, 1.0
    %v64 = vlog2.pop %v63
    %v65 = vmul.f32 %v64, 0.6931472
    %v66 = vmul.f32 -0.5, %v53
    %v67 = vadd.f32 %v66, 1.0
    %v68 = vmul.f32 %v67, %v53
    %v69 = vand.u32 2147483647, %v53
    %vm70 = vcmp.lt.f32.partialorder %v69, 0.0004427343
    %v71 = vsel %vm70, %v68, %v65
    %v72 = vadd.f32 %v46, %v62
    %v73 = vadd.f32 %v47, %v71
    %v74 = vsub.f32 %v72, 0.6931472
    %v75 = vsub.f32 %v73, 0.6931472
    %v76 = vadd.f32 %v74, %v75
    %77 = vst [vmem:[#allocation7] sm:$0xff] %v76
    // Predicated region
    $region18: #{tpu_custom_call.1} parent=1 // pred_check
      _
    $region19: #{tpu_custom_call.1} parent=1 // pred_check_branch
      %79 = sbr.rel (0) target = $region21
    $region20: #{tpu_custom_call.1} parent=1 // pred_region
      %s81 = ssub.s32 128, 128
      %82 = vsyncadd [#allocation4], %s81
      %s84 = sshll.u32 [#allocation7], 4
      %s85 = int_to_ptr.vmem [resolvable:$true] %s84
      %87 = dma.vmem_to_hbm [thread:$0]  %s85, 128, %s2, [#allocation4]
    $region21: #{tpu_custom_call.1} parent=1 // pred_fallthru
      _
    // Predicated region
    $region22: #{tpu_custom_call.1} parent=1 // pred_check
      _
    $region23: #{tpu_custom_call.1} parent=1 // pred_check_branch
      %89 = sbr.rel (0) target = $region25
    $region24: #{tpu_custom_call.1} parent=1 // pred_region
      %90 = dma.done [#allocation4], 128
    $region25: #{tpu_custom_call.1} parent=1 // pred_fallthru
      _
    %91 = vsyncpa [#allocation3], 1
    %92 = vsyncpa [#allocation6], 1
    %93 = vsyncpa [#allocation4], 1

</llo_original>
